<compile_context>
chip_gen: v7x
topology: tpu7x:2x2x1
jax: 0.10.0
libtpu: 0.0.40
codegen_flags: <defaults>
</compile_context>

<pallas_src>
import functools

import jax
import jax.numpy as jnp
import numpy as np
from jax.experimental import pallas as pl
from jax.experimental.pallas import tpu as pltpu

EPS = 1e-12


# ------------------ Pallas kernel 1: adaptive spectral-norm update -----------
def sn_update_kernel(w_ref, prew_ref, u_ref, wout_ref, uout_ref, vout_ref):
    w = w_ref[...]          # (Hgt, Wd)   = weight.view(height, -1), f32
    pw = prew_ref[...]      # (Hgt, Wd)   = pre_w.view(height, -1),  f32
    u = u_ref[...]          # (1, Hgt)

    # one power iteration (power_iterations = 1):
    #   v = l2normalize(W^T u) ; u = l2normalize(W v)
    # scalar reciprocals + broadcast multiplies instead of broadcast divides.
    v = jnp.dot(u, w, preferred_element_type=jnp.float32)              # (1, Wd)
    v = v * (1.0 / (jnp.sqrt(jnp.sum(v * v)) + EPS))

    wv = jax.lax.dot_general(v, w, (((1,), (1,)), ((), ())),
                             preferred_element_type=jnp.float32)       # (1, Hgt) = (W v)^T
    u_new = wv * (1.0 / (jnp.sqrt(jnp.sum(wv * wv)) + EPS))

    # sigma = u . (W v)   (clamped to guard degenerate / near-zero weights)
    sigma = jnp.sum(u_new * wv)
    sigma_c = jnp.maximum(sigma, EPS)

    # sigma_amp = | u . (pre_W v) / sigma | ;  if > 1 -> reciprocal
    pwv = jax.lax.dot_general(v, pw, (((1,), (1,)), ((), ())),
                              preferred_element_type=jnp.float32)      # (1, Hgt)
    sigma_amp = jnp.abs(jnp.sum(u_new * pwv) * (1.0 / sigma_c))
    sigma_amp = jnp.where(sigma_amp > 1.0, 1.0 / sigma_amp, sigma_amp)

    # sigma = sigma ** sigma_amp
    sigma_eff = jnp.exp(sigma_amp * jnp.log(sigma_c))
    inv_sigma = 1.0 / sigma_eff                                        # scalar

    # single O(Hgt*Wd) VPU pass: reciprocal-multiply, W read once for
    # the matvecs above and the normalized write below.
    wout_ref[...] = w * inv_sigma
    uout_ref[...] = u_new
    vout_ref[...] = v


def sn_update(w2d, prew2d, u):
    # NOTE: the conv weight here is tiny (Cout x Cin*kH*kW = 8 x 36), so both
    # W and pre_W stay fully VMEM-resident.  For large conv layers this call
    # should be tiled over the Wd axis with an "arbitrary" reduction grid and
    # f32 accumulators for v / Wv / pre_W v.
    hgt, wd = w2d.shape
    vmem = pl.BlockSpec(memory_space=pltpu.MemorySpace.VMEM)
    w_out, u_out, v_out = pl.pallas_call(
        sn_update_kernel,
        out_shape=(
            jax.ShapeDtypeStruct((hgt, wd), jnp.float32),
            jax.ShapeDtypeStruct((1, hgt), jnp.float32),
            jax.ShapeDtypeStruct((1, wd), jnp.float32),
        ),
        in_specs=[vmem, vmem, vmem],
        out_specs=(vmem, vmem, vmem),
    )(w2d, prew2d, u.reshape(1, hgt))
    return w_out, u_out.reshape(hgt), v_out.reshape(wd)


# ------------------ Pallas kernel 2: fused-im2col conv forward ---------------
def conv_fused_kernel(x_ref, w_ref, b_ref, out_ref, *, kh, kw, wp, mo):
    # x_ref  : (Cin, Lflat)      bf16  flattened, zero-padded input (one image)
    # w_ref  : (kh*kw, Cout, Cin) bf16  per-tap weight slabs
    # b_ref  : (Cout, 1)          f32   bias
    # out_ref: (Cout, MO)         f32   "row-padded" output, MO = Ho * Wp
    acc = None
    for i in range(kh):
        for j in range(kw):
            t = i * kw + j
            off = i * wp + j                                   # static offset
            xs = x_ref[:, pl.ds(off, mo)]                      # (Cin, MO)
            part = jnp.dot(w_ref[t], xs,                       # (Cout, MO) f32
                           preferred_element_type=jnp.float32)
            acc = part if acc is None else acc + part
    out_ref[...] = acc + b_ref[...]


def conv2d_pallas(x, w, b, padding=1, compute_dtype=jnp.bfloat16):
    n, cin, h, wdt = x.shape
    cout, _, kh, kw = w.shape
    hp, wp = h + 2 * padding, wdt + 2 * padding
    ho, wo = hp - kh + 1, wp - kw + 1
    mo = ho * wp                       # row-padded flattened output length
    lflat = hp * wp + (kw - 1)         # flattened padded input + tail slack

    # Pad + flatten spatial dims (contiguous reshape; no 9x im2col in HBM).
    xq = x.astype(compute_dtype)
    xp = jnp.pad(xq, ((0, 0), (0, 0), (padding, padding), (padding, padding)))
    xf = xp.reshape(n, cin, hp * wp)
    xf = jnp.pad(xf, ((0, 0), (0, 0), (0, kw - 1)))            # tail slack

    # Per-tap weight slabs so the in-kernel contraction is a plain jnp.dot
    # over Cin: w_taps[i*kw+j, o, c] = w[o, c, i, j].
    w_taps = w.astype(compute_dtype).transpose(2, 3, 0, 1).reshape(kh * kw, cout, cin)
    b2 = b.reshape(cout, 1).astype(jnp.float32)

    kernel = functools.partial(conv_fused_kernel, kh=kh, kw=kw, wp=wp, mo=mo)

    # Grid over batch; "parallel" lets Mosaic shard images across the two
    # TensorCores on v7x.  For large spatial sizes add a second grid axis over
    # output-row tiles (halo of kh-1 rows per tile) to keep VMEM tiles small.
    out = pl.pallas_call(
        kernel,
        out_shape=jax.ShapeDtypeStruct((n, cout, mo), jnp.float32),
        grid=(n,),
        in_specs=[
            pl.BlockSpec((None, cin, lflat), lambda nb: (nb, 0, 0)),
            pl.BlockSpec((kh * kw, cout, cin), lambda nb: (0, 0, 0)),
            pl.BlockSpec((cout, 1), lambda nb: (0, 0)),
        ],
        out_specs=pl.BlockSpec((None, cout, mo), lambda nb: (nb, 0, 0)),
        compiler_params=pltpu.CompilerParams(
            dimension_semantics=("parallel",),
            vmem_limit_bytes=32 * 1024 * 1024,
        ),
    )(xf, w_taps, b2)

    # (N, Cout, Ho*Wp) -> (N, Cout, Ho, Wp) is a free contiguous reshape; drop
    # the kw-1 garbage columns of the row-padded geometry.  Output is already
    # NCHW -- no full-activation transpose.
    return out.reshape(n, cout, ho, wp)[:, :, :, :wo]


# ------------------ SpectralNorm(Conv2d) module mirror ------------------------
class SpectralNormConv2d:
    """Mirrors SpectralNorm(nn.Conv2d(cin, cout, k, padding=1)) in training mode."""

    def __init__(self, cin, cout, k=3, padding=1, key=None):
        k1, k2, k3, k4 = jax.random.split(key, 4)
        fan_in = cin * k * k
        bound = 1.0 / np.sqrt(fan_in)
        self.weight = jax.random.uniform(k1, (cout, cin, k, k), jnp.float32, -bound, bound)
        self.bias = jax.random.uniform(k2, (cout,), jnp.float32, -bound, bound)
        # weight_u / weight_v registered as N(0,1) in _make_params
        self.u = jax.random.normal(k3, (cout,), jnp.float32)
        self.v = jax.random.normal(k4, (fan_in,), jnp.float32)
        self.pre_w = None
        self.padding = padding
        self.power_iterations = 1

    def _init_param(self):
        hgt = self.weight.shape[0]
        w2d = self.weight.reshape(hgt, -1)
        # TODO(synk): torch.svd has no Pallas equivalent; this one-time parameter
        # setup is done in plain JAX (glue), matching _init_param semantics.
        u_mat, s, vh = jnp.linalg.svd(w2d, full_matrices=False)
        self.u = u_mat[:, 0]
        self.v = vh[0, :]
        self.weight = self.weight / s[0]
        self.pre_w = self.weight

    def _update_u_v(self):
        if self.pre_w is None:
            self._init_param()
        hgt = self.weight.shape[0]
        w2d = self.weight.reshape(hgt, -1)
        prew2d = self.pre_w.reshape(hgt, -1)
        # power_iterations == 1 is baked into the kernel
        w2d_new, u_new, v_new = sn_update(w2d, prew2d, self.u)
        self.u = u_new
        self.v = v_new
        self.weight = w2d_new.reshape(self.weight.shape)
        self.pre_w = self.weight

    def forward(self, x, training=True):
        if training:
            self._update_u_v()
        return conv2d_pallas(x, self.weight, self.bias, self.padding)


if __name__ == "__main__":
    key = jax.random.PRNGKey(0)
    kx, kp = jax.random.split(key)

    x = jax.random.normal(kx, (2, 4, 16, 16), jnp.float32)      # NCHW
    mod = SpectralNormConv2d(cin=4, cout=8, k=3, padding=1, key=kp)

    # two training-mode forward passes: first exercises SVD init + update,
    # second exercises the adaptive sigma_amp path (pre_w != w).
    y = mod.forward(x, training=True)
    y = mod.forward(x, training=True)
    y = jax.block_until_ready(y)

    # sanity check: Pallas conv output vs XLA conv using the same bf16-rounded
    # inputs (the kernel feeds bf16 to the MXU, f32 accumulation).
    xb = x.astype(jnp.bfloat16).astype(jnp.float32)
    wb = mod.weight.astype(jnp.bfloat16).astype(jnp.float32)
    ref = jax.lax.conv_general_dilated(
        xb, wb, window_strides=(1, 1), padding=((1, 1), (1, 1)),
        dimension_numbers=("NCHW", "OIHW", "NCHW"),
    ) + mod.bias.reshape(1, -1, 1, 1)
    np.testing.assert_allclose(np.asarray(y), np.asarray(ref), rtol=1e-3, atol=1e-3)
    assert y.shape == (2, 8, 16, 16) and y.dtype == jnp.float32

    print("KERNEL_OK")
</pallas_src>

<mosaic_0001>
module attributes {stable_mosaic.version = 11 : i64} {
  func.func @sn_update_kernel(%arg0: memref<8x36xf32, #tpu.memory_space<vmem>>, %arg1: memref<8x36xf32, #tpu.memory_space<vmem>>, %arg2: memref<1x8xf32, #tpu.memory_space<vmem>>, %arg3: memref<8x36xf32, #tpu.memory_space<vmem>>, %arg4: memref<1x8xf32, #tpu.memory_space<vmem>>, %arg5: memref<1x36xf32, #tpu.memory_space<vmem>>) attributes {dimension_semantics = [], scalar_prefetch = 0 : i64, scratch_operands = 0 : i64, tpu.core_type = #tpu.core_type<tc>} {
    %c0 = arith.constant 0 : index
    %c0_0 = arith.constant 0 : index
    %0 = vector.load %arg0[%c0, %c0_0] : memref<8x36xf32, #tpu.memory_space<vmem>>, vector<8x36xf32>
    %c0_1 = arith.constant 0 : index
    %c0_2 = arith.constant 0 : index
    %1 = vector.load %arg1[%c0_1, %c0_2] : memref<8x36xf32, #tpu.memory_space<vmem>>, vector<8x36xf32>
    %c0_3 = arith.constant 0 : index
    %c0_4 = arith.constant 0 : index
    %2 = vector.load %arg2[%c0_3, %c0_4] : memref<1x8xf32, #tpu.memory_space<vmem>>, vector<1x8xf32>
    %cst = arith.constant dense<0.000000e+00> : vector<1x36xf32>
    %3 = tpu.matmul %2, %0, %cst {dimension_numbers = #tpu.dot_dimension_numbers<[1], [0], [0], [1], [0, 0, 1, 1], [], []>} : vector<1x8xf32>, vector<8x36xf32>, vector<1x36xf32> -> vector<1x36xf32>
    %4 = arith.mulf %3, %3 : vector<1x36xf32>
    %5 = vector.shape_cast %4 : vector<1x36xf32> to vector<1x1x36xf32>
    %cst_5 = arith.constant dense<0.000000e+00> : vector<1xf32>
    %6 = vector.multi_reduction <add>, %5, %cst_5 [1, 2] : vector<1x1x36xf32> to vector<1xf32>
    %7 = vector.shape_cast %6 : vector<1xf32> to vector<1x1x1xf32>
    %8 = vector.extract %7[0, 0, 0] : f32 from vector<1x1x1xf32>
    %9 = math.sqrt %8 : f32
    %cst_6 = arith.constant 9.99999996E-13 : f32
    %10 = arith.addf %9, %cst_6 : f32
    %cst_7 = arith.constant 1.000000e+00 : f32
    %11 = arith.divf %cst_7, %10 : f32
    %12 = vector.broadcast %11 : f32 to vector<1x36xf32>
    %13 = arith.mulf %3, %12 : vector<1x36xf32>
    %cst_8 = arith.constant dense<0.000000e+00> : vector<1x8xf32>
    %14 = tpu.matmul %13, %0, %cst_8 {dimension_numbers = #tpu.dot_dimension_numbers<[1], [1], [0], [0], [0, 0, 1, 0], [], []>} : vector<1x36xf32>, vector<8x36xf32>, vector<1x8xf32> -> vector<1x8xf32>
    %15 = arith.mulf %14, %14 : vector<1x8xf32>
    %16 = vector.shape_cast %15 : vector<1x8xf32> to vector<1x1x8xf32>
    %cst_9 = arith.constant dense<0.000000e+00> : vector<1xf32>
    %17 = vector.multi_reduction <add>, %16, %cst_9 [1, 2] : vector<1x1x8xf32> to vector<1xf32>
    %18 = vector.shape_cast %17 : vector<1xf32> to vector<1x1x1xf32>
    %19 = vector.extract %18[0, 0, 0] : f32 from vector<1x1x1xf32>
    %20 = math.sqrt %19 : f32
    %cst_10 = arith.constant 9.99999996E-13 : f32
    %21 = arith.addf %20, %cst_10 : f32
    %cst_11 = arith.constant 1.000000e+00 : f32
    %22 = arith.divf %cst_11, %21 : f32
    %23 = vector.broadcast %22 : f32 to vector<1x8xf32>
    %24 = arith.mulf %14, %23 : vector<1x8xf32>
    %25 = arith.mulf %24, %14 : vector<1x8xf32>
    %26 = vector.shape_cast %25 : vector<1x8xf32> to vector<1x1x8xf32>
    %cst_12 = arith.constant dense<0.000000e+00> : vector<1xf32>
    %27 = vector.multi_reduction <add>, %26, %cst_12 [1, 2] : vector<1x1x8xf32> to vector<1xf32>
    %28 = vector.shape_cast %27 : vector<1xf32> to vector<1x1x1xf32>
    %29 = vector.extract %28[0, 0, 0] : f32 from vector<1x1x1xf32>
    %cst_13 = arith.constant 9.99999996E-13 : f32
    %30 = arith.maximumf %29, %cst_13 : f32
    %cst_14 = arith.constant dense<0.000000e+00> : vector<1x8xf32>
    %31 = tpu.matmul %13, %1, %cst_14 {dimension_numbers = #tpu.dot_dimension_numbers<[1], [1], [0], [0], [0, 0, 1, 0], [], []>} : vector<1x36xf32>, vector<8x36xf32>, vector<1x8xf32> -> vector<1x8xf32>
    %32 = arith.mulf %24, %31 : vector<1x8xf32>
    %33 = vector.shape_cast %32 : vector<1x8xf32> to vector<1x1x8xf32>
    %cst_15 = arith.constant dense<0.000000e+00> : vector<1xf32>
    %34 = vector.multi_reduction <add>, %33, %cst_15 [1, 2] : vector<1x1x8xf32> to vector<1xf32>
    %35 = vector.shape_cast %34 : vector<1xf32> to vector<1x1x1xf32>
    %36 = vector.extract %35[0, 0, 0] : f32 from vector<1x1x1xf32>
    %cst_16 = arith.constant 1.000000e+00 : f32
    %37 = arith.divf %cst_16, %30 : f32
    %38 = arith.mulf %36, %37 : f32
    %39 = math.absf %38 : f32
    %cst_17 = arith.constant 1.000000e+00 : f32
    %40 = arith.cmpf ogt, %39, %cst_17 : f32
    %cst_18 = arith.constant 1.000000e+00 : f32
    %41 = arith.divf %cst_18, %39 : f32
    %42 = arith.select %40, %41, %39 : f32
    %43 = math.log %30 : f32
    %44 = arith.mulf %42, %43 : f32
    %45 = math.exp %44 : f32
    %cst_19 = arith.constant 1.000000e+00 : f32
    %46 = arith.divf %cst_19, %45 : f32
    %47 = vector.broadcast %46 : f32 to vector<8x36xf32>
    %48 = arith.mulf %0, %47 : vector<8x36xf32>
    %c0_20 = arith.constant 0 : index
    %c0_21 = arith.constant 0 : index
    %49 = vector.load %arg3[%c0_20, %c0_21] : memref<8x36xf32, #tpu.memory_space<vmem>>, vector<8x36xf32>
    tpu.vector_store %arg3[%c0_20, %c0_21], %48 {strides = array<i32>} : memref<8x36xf32, #tpu.memory_space<vmem>>, vector<8x36xf32>,
    %c0_22 = arith.constant 0 : index
    %c0_23 = arith.constant 0 : index
    %50 = vector.load %arg4[%c0_22, %c0_23] : memref<1x8xf32, #tpu.memory_space<vmem>>, vector<1x8xf32>
    tpu.vector_store %arg4[%c0_22, %c0_23], %24 {strides = array<i32>} : memref<1x8xf32, #tpu.memory_space<vmem>>, vector<1x8xf32>,
    %c0_24 = arith.constant 0 : index
    %c0_25 = arith.constant 0 : index
    %51 = vector.load %arg5[%c0_24, %c0_25] : memref<1x36xf32, #tpu.memory_space<vmem>>, vector<1x36xf32>
    tpu.vector_store %arg5[%c0_24, %c0_25], %13 {strides = array<i32>} : memref<1x36xf32, #tpu.memory_space<vmem>>, vector<1x36xf32>,
    return
  }
}

</mosaic_0001>

<llo_original>
// kernel: tpu_custom_call.1
$region0: #{tpu_custom_call.1}
  #allocation0 [shape = 'u32[]', space=smem, size = 0x4, offset = 0x4, fixed_abs, tag = 'smem constant byte address 0x4 - core index']
  #allocation1 [shape = 'u32[144,128]{1,0:T(1,128)}', space=vmem, size = 0x12000, scoped, tag = 'internal scratch']
  %s0 = inlined_call_operand.hbm [shape: f32[8,36], index: 0, kind: input, shape index: {}]
  %s1 = inlined_call_operand.hbm [shape: f32[8,36], index: 1, kind: input, shape index: {}]
  %s2 = inlined_call_operand.vmem [shape: f32[1,8], index: 2, kind: input, shape index: {}]
  %s3 = inlined_call_operand.hbm [shape: f32[8,36], index: 3, kind: output, shape index: {0}]
  %s4 = inlined_call_operand.hbm [shape: f32[1,8], index: 4, kind: output, shape index: {1}]
  %s5 = inlined_call_operand.hbm [shape: f32[1,36], index: 5, kind: output, shape index: {2}]
  %6 = xla_tuple %s3, %s4, %s5
  %s7 = sld [smem:[#allocation0]]
  $region46: #{tpu_custom_call.1} parent=0
    _
  %s9 = ssub.s32 1, %s7
  %s10 = scalar_select 0, %s9, %s7
  $region1: #{tpu_custom_call.1} parent=0
    #allocation2 [shape = 'u8[4096]{0}', space=vmem, size = 0x1000, scoped, tag = 'input window, operand 0, single buffered']
    #allocation3 [shape = 's32[1]{0}', space=sflag, size = 0x4, scoped, tag = 'scoped memory for tpu_custom_call.1']
    #allocation4 [shape = 's32[1]{0}', space=sflag, size = 0x4, scoped, tag = 'scoped memory for tpu_custom_call.1']
    #allocation5 [shape = 'u8[4096]{0}', space=vmem, size = 0x1000, scoped, tag = 'input window, operand 1, single buffered']
    #allocation6 [shape = 's32[1]{0}', space=sflag, size = 0x4, scoped, tag = 'scoped memory for tpu_custom_call.1']
    #allocation7 [shape = 'u8[4096]{0}', space=vmem, size = 0x1000, scoped, tag = 'output window, operand 0, single buffered']
    #allocation8 [shape = 'u8[512]{0}', space=vmem, size = 0x400, scoped, tag = 'output window, operand 1, single buffered']
    #allocation9 [shape = 's32[1]{0}', space=sflag, size = 0x4, scoped, tag = 'scoped memory for tpu_custom_call.1']
    #allocation10 [shape = 'u8[512]{0}', space=vmem, size = 0x400, scoped, tag = 'output window, operand 2, single buffered']
    %11 = vsyncpa [#allocation3], 0
    %12 = vsyncpa [#allocation6], 0
    %13 = vsyncpa [#allocation4], 0
    %14 = vsyncpa [#allocation9], 0
    // Predicated region
    $region2: #{tpu_custom_call.1} parent=1 // pred_check
      _
    $region3: #{tpu_custom_call.1} parent=1 // pred_check_branch
      %16 = sbr.rel (0) target = $region5
    $region4: #{tpu_custom_call.1} parent=1 // pred_region
      %s18 = ssub.s32 128, 128
      %19 = vsyncadd [#allocation3], %s18
      %s21 = sshll.u32 [#allocation2], 4
      %s22 = int_to_ptr.vmem [resolvable:$true] %s21
      %24 = dma.hbm_to_vmem [thread:$0]  %s0, 128, %s22, [#allocation3]
    $region5: #{tpu_custom_call.1} parent=1 // pred_fallthru
      _
    // Predicated region
    $region6: #{tpu_custom_call.1} parent=1 // pred_check
      _
    $region7: #{tpu_custom_call.1} parent=1 // pred_check_branch
      %26 = sbr.rel (0) target = $region9
    $region8: #{tpu_custom_call.1} parent=1 // pred_region
      %s28 = ssub.s32 128, 128
      %29 = vsyncadd [#allocation6], %s28
      %s31 = sshll.u32 [#allocation5], 4
      %s32 = int_to_ptr.vmem [resolvable:$true] %s31
      %34 = dma.hbm_to_vmem [thread:$0]  %s1, 128, %s32, [#allocation6]
    $region9: #{tpu_custom_call.1} parent=1 // pred_fallthru
      _
    // Predicated region
    $region10: #{tpu_custom_call.1} parent=1 // pred_check
      _
    $region11: #{tpu_custom_call.1} parent=1 // pred_check_branch
      %36 = sbr.rel (0) target = $region13
    $region12: #{tpu_custom_call.1} parent=1 // pred_region
      _
    $region13: #{tpu_custom_call.1} parent=1 // pred_fallthru
      _
    // Predicated region
    $region14: #{tpu_custom_call.1} parent=1 // pred_check
      _
    $region15: #{tpu_custom_call.1} parent=1 // pred_check_branch
      %38 = sbr.rel (0) target = $region17
    $region16: #{tpu_custom_call.1} parent=1 // pred_region
      %39 = dma.done [#allocation3], 128
    $region17: #{tpu_custom_call.1} parent=1 // pred_fallthru
      _
    // Predicated region
    $region18: #{tpu_custom_call.1} parent=1 // pred_check
      _
    $region19: #{tpu_custom_call.1} parent=1 // pred_check_branch
      %41 = sbr.rel (0) target = $region21
    $region20: #{tpu_custom_call.1} parent=1 // pred_region
      %42 = dma.done [#allocation6], 128
    $region21: #{tpu_custom_call.1} parent=1 // pred_fallthru
      _
    %v43 = vld [vmem:[#allocation2] sm:$0xff]
    %v44 = vld [vmem:[#allocation5] sm:$0xff]
    %v45 = vld [vmem:[%s2] sm:$0x1]
    %vm46 = vcmask 64512
    %v48 = vsel %vm46, %v45, 0
    %50 = vmatprep.subr.mxu0 0.0
    %51 = vmatpush1.msra.mxu0 %v43
    %52 = vmatprep.subr.mxu0 0.0
    %53 = vmatpush1.msra.mxu0 0.0
    %54 = vmatprep.subr.mxu0 0.0
    %55 = vmatpush1.msra.mxu0 0.0
    %56 = vmatprep.subr.mxu0 0.0
    %57 = vmatpush1.msra.mxu0 0.0
    %58 = vmatprep.subr.mxu0 0.0
    %59 = vmatpush1.msra.mxu0 0.0
    %60 = vmatprep.subr.mxu0 0.0
    %61 = vmatpush1.msra.mxu0 0.0
    %62 = vmatprep.subr.mxu0 0.0
    %63 = vmatpush1.msra.mxu0 0.0
    %64 = vmatprep.subr.mxu0 0.0
    %65 = vmatpush1.msra.mxu0 0.0
    %66 = vmatprep.subr.mxu0 0.0
    %67 = vmatpush1.msra.mxu0 0.0
    %68 = vmatprep.subr.mxu0 0.0
    %69 = vmatpush1.msra.mxu0 0.0
    %70 = vmatprep.subr.mxu0 0.0
    %71 = vmatpush1.msra.mxu0 0.0
    %72 = vmatprep.subr.mxu0 0.0
    %73 = vmatpush1.msra.mxu0 0.0
    %74 = vmatprep.subr.mxu0 0.0
    %75 = vmatpush1.msra.mxu0 0.0
    %76 = vmatprep.subr.mxu0 0.0
    %77 = vmatpush1.msra.mxu0 0.0
    %78 = vmatprep.subr.mxu0 0.0
    %79 = vmatpush1.msra.mxu0 0.0
    %80 = vmatprep.subr.mxu0 0.0
    %81 = vmatpush1.msra.mxu0 0.0
    %82 = vmatprep.subr.mxu0 0.0
    %83 = vmatpush1.msra.mxu0 0.0
    %84 = vmatprep.subr.mxu0 0.0
    %85 = vmatpush1.msra.mxu0 0.0
    %86 = vmatprep.subr.mxu0 0.0
    %87 = vmatpush1.msra.mxu0 0.0
    %88 = vmatprep.subr.mxu0 0.0
    %89 = vmatpush1.msra.mxu0 0.0
    %90 = vmatprep.subr.mxu0 0.0
    %91 = vmatpush1.msra.mxu0 0.0
    %92 = vmatprep.subr.mxu0 0.0
    %93 = vmatpush1.msra.mxu0 0.0
    %94 = vmatprep.subr.mxu0 0.0
    %95 = vmatpush1.msra.mxu0 0.0
    %96 = vmatprep.subr.mxu0 0.0
    %97 = vmatpush1.msra.mxu0 0.0
    %98 = vmatprep.subr.mxu0 0.0
    %99 = vmatpush1.msra.mxu0 0.0
    %100 = vmatprep.subr.mxu0 0.0
    %101 = vmatpush1.msra.mxu0 0.0
    %102 = vmatprep.subr.mxu0 0.0
    %103 = vmatpush1.msra.mxu0 0.0
    %104 = vmatprep.subr.mxu0 0.0
    %105 = vmatpush1.msra.mxu0 0.0
    %106 = vmatprep.subr.mxu0 0.0
    %107 = vmatpush1.msra.mxu0 0.0
    %108 = vmatprep.subr.mxu0 0.0
    %109 = vmatpush1.msra.mxu0 0.0
    %110 = vmatprep.subr.mxu0 0.0
    %111 = vmatpush1.msra.mxu0 0.0
    %112 = vmatprep.subr.mxu0 0.0
    %113 = vmatpush1.msra.mxu0 0.0
    %114 = vmatprep.mubr.f32.mxu0 0.0
    %115 = vmatmul.mubr.f32.gmra.mrb[0].mxu0 %v48
    %v116 = vpop.f32.mrb[0].mxu0
    %v117 = vadd.f32 0.0, %v116
    %v118 = vpop.f32.mrb[0].mxu0
    %119 = vdwg.mxu0
    %v120 = vmul.f32 %v117, %v117
    %vm121 = vcmask 286720
    %v122 = vsel %vm121, %v120, 0.0
    %123 = vadd.xlane.f32.xlu0 %v122
    %v124 = vpop.xlane.xlu0 %123
    %v125 = vrot.slane %v124, 4
    %v126 = vadd.f32 %v124, %v125
    %v127 = vrot.slane %v126, 2
    %v128 = vadd.f32 %v126, %v127
    %v129 = vrot.slane %v128, 1
    %v130 = vadd.f32 %v128, %v129
    %s131 = vtos %v130
    %v132 = vstv %s131
    %v133 = vrsqrt.pop %v132
    %v134 = vmul.f32 %v132, %v133
    %vm135 = vcmp.eq.f32.partialorder %v132, inf
    %v136 = vsel %vm135, %v132, %v134
    %vm137 = vcmp.eq.f32.partialorder %v132, 0.0
    %v138 = vand.u32 %v132, 2147483648
    %v139 = vsel %vm137, %v138, %v136
    %s140 = vtos %v139
    %s141 = sadd.f32 %s140, 1e-12
    %v142 = vstv %s141
    %v143 = vrcp.pop %v142
    %s144 = vtos %v143
    %v145 = vstv %s144
    %v146 = vmul.f32 %v117, %v145
    %vm147 = vcmask 293888
    %v149 = vsel %vm147, %v146, 0
    %v152 = vsel %vm147, %v43, 0
    %154 = vmatprep.subr.mxu0 0.0
    %155 = vmatpush1.xpose.msra.mxu0 %v152
    %156 = vmatprep.subr.mxu0 0.0
    %157 = vmatpush1.xpose.msra.mxu0 0.0
    %158 = vmatprep.subr.mxu0 0.0
    %159 = vmatpush1.xpose.msra.mxu0 0.0
    %160 = vmatprep.subr.mxu0 0.0
    %161 = vmatpush1.xpose.msra.mxu0 0.0
    %162 = vmatprep.subr.mxu0 0.0
    %163 = vmatpush1.xpose.msra.mxu0 0.0
    %164 = vmatprep.subr.mxu0 0.0
    %165 = vmatpush1.xpose.msra.mxu0 0.0
    %166 = vmatprep.subr.mxu0 0.0
    %167 = vmatpush1.xpose.msra.mxu0 0.0
    %168 = vmatprep.subr.mxu0 0.0
    %169 = vmatpush1.xpose.msra.mxu0 0.0
    %170 = vmatprep.subr.mxu0 0.0
    %171 = vmatpush1.xpose.msra.mxu0 0.0
    %172 = vmatprep.subr.mxu0 0.0
    %173 = vmatpush1.xpose.msra.mxu0 0.0
    %174 = vmatprep.subr.mxu0 0.0
    %175 = vmatpush1.xpose.msra.mxu0 0.0
    %176 = vmatprep.subr.mxu0 0.0
    %177 = vmatpush1.xpose.msra.mxu0 0.0
    %178 = vmatprep.subr.mxu0 0.0
    %179 = vmatpush1.xpose.msra.mxu0 0.0
    %180 = vmatprep.subr.mxu0 0.0
    %181 = vmatpush1.xpose.msra.mxu0 0.0
    %182 = vmatprep.subr.mxu0 0.0
    %183 = vmatpush1.xpose.msra.mxu0 0.0
    %184 = vmatprep.subr.mxu0 0.0
    %185 = vmatpush1.xpose.msra.mxu0 0.0
    %186 = vmatprep.subr.mxu0 0.0
    %187 = vmatpush1.xpose.msra.mxu0 0.0
    %188 = vmatprep.subr.mxu0 0.0
    %189 = vmatpush1.xpose.msra.mxu0 0.0
    %190 = vmatprep.subr.mxu0 0.0
    %191 = vmatpush1.xpose.msra.mxu0 0.0
    %192 = vmatprep.subr.mxu0 0.0
    %193 = vmatpush1.xpose.msra.mxu0 0.0
    %194 = vmatprep.subr.mxu0 0.0
    %195 = vmatpush1.xpose.msra.mxu0 0.0
    %196 = vmatprep.subr.mxu0 0.0
    %197 = vmatpush1.xpose.msra.mxu0 0.0
    %198 = vmatprep.subr.mxu0 0.0
    %199 = vmatpush1.xpose.msra.mxu0 0.0
    %200 = vmatprep.subr.mxu0 0.0
    %201 = vmatpush1.xpose.msra.mxu0 0.0
    %202 = vmatprep.subr.mxu0 0.0
    %203 = vmatpush1.xpose.msra.mxu0 0.0
    %204 = vmatprep.subr.mxu0 0.0
    %205 = vmatpush1.xpose.msra.mxu0 0.0
    %206 = vmatprep.subr.mxu0 0.0
    %207 = vmatpush1.xpose.msra.mxu0 0.0
    %208 = vmatprep.subr.mxu0 0.0
    %209 = vmatpush1.xpose.msra.mxu0 0.0
    %210 = vmatprep.subr.mxu0 0.0
    %211 = vmatpush1.xpose.msra.mxu0 0.0
    %212 = vmatprep.subr.mxu0 0.0
    %213 = vmatpush1.xpose.msra.mxu0 0.0
    %214 = vmatprep.subr.mxu0 0.0
    %215 = vmatpush1.xpose.msra.mxu0 0.0
    %216 = vmatprep.subr.mxu0 0.0
    %217 = vmatpush1.xpose.msra.mxu0 0.0
    %218 = vmatprep.mubr.f32.mxu0 0.0
    %219 = vmatmul.mubr.f32.gmra.mrb[0].mxu0 %v149
    %v220 = vpop.f32.mrb[0].mxu0
    %v221 = vadd.f32 0.0, %v220
    %v222 = vpop.f32.mrb[0].mxu0
    %223 = vdwg.mxu0
    %v224 = vmul.f32 %v221, %v221
    %vm225 = vcmask 57344
    %v226 = vsel %vm225, %v224, 0.0
    %227 = vadd.xlane.f32.xlu0 %v226
    %v228 = vpop.xlane.xlu0 %227
    %v229 = vrot.slane %v228, 4
    %v230 = vadd.f32 %v228, %v229
    %v231 = vrot.slane %v230, 2
    %v232 = vadd.f32 %v230, %v231
    %v233 = vrot.slane %v232, 1
    %v234 = vadd.f32 %v232, %v233
    %s235 = vtos %v234
    %v236 = vstv %s235
    %v237 = vrsqrt.pop %v236
    %v238 = vmul.f32 %v236, %v237
    %vm239 = vcmp.eq.f32.partialorder %v236, inf
    %v240 = vsel %vm239, %v236, %v238
    %vm241 = vcmp.eq.f32.partialorder %v236, 0.0
    %v242 = vand.u32 %v236, 2147483648
    %v243 = vsel %vm241, %v242, %v240
    %s244 = vtos %v243
    %s245 = sadd.f32 %s244, 1e-12
    %v246 = vstv %s245
    %v247 = vrcp.pop %v246
    %s248 = vtos %v247
    %v249 = vstv %s248
    %v250 = vmul.f32 %v221, %v249
    %v251 = vmul.f32 %v250, %v221
    %v252 = vsel %vm225, %v251, 0.0
    %253 = vadd.xlane.f32.xlu0 %v252
    %v254 = vpop.xlane.xlu0 %253
    %v255 = vrot.slane %v254, 4
    %v256 = vadd.f32 %v254, %v255
    %v257 = vrot.slane %v256, 2
    %v258 = vadd.f32 %v256, %v257
    %v259 = vrot.slane %v258, 1
    %v260 = vadd.f32 %v258, %v259
    %s261 = vtos %v260
    %s262 = smax.f32 %s261, 1e-12
    %v264 = vsel %vm147, %v44, 0
    %266 = vmatprep.subr.mxu0 0.0
    %267 = vmatpush1.xpose.msra.mxu0 %v264
    %268 = vmatprep.subr.mxu0 0.0
    %269 = vmatpush1.xpose.msra.mxu0 0.0
    %270 = vmatprep.subr.mxu0 0.0
    %271 = vmatpush1.xpose.msra.mxu0 0.0
    %272 = vmatprep.subr.mxu0 0.0
    %273 = vmatpush1.xpose.msra.mxu0 0.0
    %274 = vmatprep.subr.mxu0 0.0
    %275 = vmatpush1.xpose.msra.mxu0 0.0
    %276 = vmatprep.subr.mxu0 0.0
    %277 = vmatpush1.xpose.msra.mxu0 0.0
    %278 = vmatprep.subr.mxu0 0.0
    %279 = vmatpush1.xpose.msra.mxu0 0.0
    %280 = vmatprep.subr.mxu0 0.0
    %281 = vmatpush1.xpose.msra.mxu0 0.0
    %282 = vmatprep.subr.mxu0 0.0
    %283 = vmatpush1.xpose.msra.mxu0 0.0
    %284 = vmatprep.subr.mxu0 0.0
    %285 = vmatpush1.xpose.msra.mxu0 0.0
    %286 = vmatprep.subr.mxu0 0.0
    %287 = vmatpush1.xpose.msra.mxu0 0.0
    %288 = vmatprep.subr.mxu0 0.0
    %289 = vmatpush1.xpose.msra.mxu0 0.0
    %290 = vmatprep.subr.mxu0 0.0
    %291 = vmatpush1.xpose.msra.mxu0 0.0
    %292 = vmatprep.subr.mxu0 0.0
    %293 = vmatpush1.xpose.msra.mxu0 0.0
    %294 = vmatprep.subr.mxu0 0.0
    %295 = vmatpush1.xpose.msra.mxu0 0.0
    %296 = vmatprep.subr.mxu0 0.0
    %297 = vmatpush1.xpose.msra.mxu0 0.0
    %298 = vmatprep.subr.mxu0 0.0
    %299 = vmatpush1.xpose.msra.mxu0 0.0
    %300 = vmatprep.subr.mxu0 0.0
    %301 = vmatpush1.xpose.msra.mxu0 0.0
    %302 = vmatprep.subr.mxu0 0.0
    %303 = vmatpush1.xpose.msra.mxu0 0.0
    %304 = vmatprep.subr.mxu0 0.0
    %305 = vmatpush1.xpose.msra.mxu0 0.0
    %306 = vmatprep.subr.mxu0 0.0
    %307 = vmatpush1.xpose.msra.mxu0 0.0
    %308 = vmatprep.subr.mxu0 0.0
    %309 = vmatpush1.xpose.msra.mxu0 0.0
    %310 = vmatprep.subr.mxu0 0.0
    %311 = vmatpush1.xpose.msra.mxu0 0.0
    %312 = vmatprep.subr.mxu0 0.0
    %313 = vmatpush1.xpose.msra.mxu0 0.0
    %314 = vmatprep.subr.mxu0 0.0
    %315 = vmatpush1.xpose.msra.mxu0 0.0
    %316 = vmatprep.subr.mxu0 0.0
    %317 = vmatpush1.xpose.msra.mxu0 0.0
    %318 = vmatprep.subr.mxu0 0.0
    %319 = vmatpush1.xpose.msra.mxu0 0.0
    %320 = vmatprep.subr.mxu0 0.0
    %321 = vmatpush1.xpose.msra.mxu0 0.0
    %322 = vmatprep.subr.mxu0 0.0
    %323 = vmatpush1.xpose.msra.mxu0 0.0
    %324 = vmatprep.subr.mxu0 0.0
    %325 = vmatpush1.xpose.msra.mxu0 0.0
    %326 = vmatprep.subr.mxu0 0.0
    %327 = vmatpush1.xpose.msra.mxu0 0.0
    %328 = vmatprep.subr.mxu0 0.0
    %329 = vmatpush1.xpose.msra.mxu0 0.0
    %330 = vmatprep.mubr.f32.mxu0 0.0
    %331 = vmatmul.mubr.f32.gmra.mrb[0].mxu0 %v149
    %v332 = vpop.f32.mrb[0].mxu0
    %v333 = vadd.f32 0.0, %v332
    %v334 = vpop.f32.mrb[0].mxu0
    %335 = vdwg.mxu0
    %v336 = vmul.f32 %v250, %v333
    %v337 = vsel %vm225, %v336, 0.0
    %338 = vadd.xlane.f32.xlu0 %v337
    %v339 = vpop.xlane.xlu0 %338
    %v340 = vrot.slane %v339, 4
    %v341 = vadd.f32 %v339, %v340
    %v342 = vrot.slane %v341, 2
    %v343 = vadd.f32 %v341, %v342
    %v344 = vrot.slane %v343, 1
    %v345 = vadd.f32 %v343, %v344
    %s346 = vtos %v345
    %v347 = vstv %s262
    %v348 = vrcp.pop %v347
    %s349 = vtos %v348
    %s350 = smul.f32 %s346, %s349
    %s351 = sand.u32 2147483647, %s350
    %p352 = scmp.gt.f32.partialorder %s351, 1.0
    %v353 = vstv %s351
    %v354 = vrcp.pop %v353
    %s355 = vtos %v354
    %s356 = scalar_select %p352, %s355, %s351
    %v357 = vstv %s262
    %v358 = vlog2.pop %v357
    %v359 = vmul.f32 %v358, 0.6931472
    %s360 = vtos %v359
    %s361 = smul.f32 %s356, %s360
    %v362 = vstv %s361
    %v363 = vmul.f32 %v362, 1.442695
    %v364 = vpow.pop %v363
    %s365 = vtos %v364
    %v366 = vstv %s365
    %v367 = vrcp.pop %v366
    %s368 = vtos %v367
    %v369 = vstv %s368
    %v370 = vmul.f32 %v43, %v369
    %371 = vst.msk [vmem:[#allocation7] sm:$0xff] %vm147, %v370
    %372 = vst.msk [vmem:[#allocation8] sm:$0x1] %vm225, %v250
    %373 = vst.msk [vmem:[#allocation10] sm:$0x1] %vm121, %v146
    // Predicated region
    $region22: #{tpu_custom_call.1} parent=1 // pred_check
      _
    $region23: #{tpu_custom_call.1} parent=1 // pred_check_branch
      %375 = sbr.rel (0) target = $region25
    $region24: #{tpu_custom_call.1} parent=1 // pred_region
      %s377 = ssub.s32 128, 128
      %378 = vsyncadd [#allocation4], %s377
      %s380 = sshll.u32 [#allocation7], 4
      %s381 = int_to_ptr.vmem [resolvable:$true] %s380
      %383 = dma.vmem_to_hbm [thread:$0]  %s381, 128, %s3, [#allocation4]
    $region25: #{tpu_custom_call.1} parent=1 // pred_fallthru
      _
    // Predicated region
    $region26: #{tpu_custom_call.1} parent=1 // pred_check
      _
    $region27: #{tpu_custom_call.1} parent=1 // pred_check_branch
      %385 = sbr.rel (0) target = $region29
    $region28: #{tpu_custom_call.1} parent=1 // pred_region
      %s387 = ssub.s32 16, 16
      %388 = vsyncadd [#allocation9], %s387
      %s390 = sshll.u32 [#allocation8], 4
      %s391 = int_to_ptr.vmem [resolvable:$true] %s390
      %393 = dma.vmem_to_hbm [thread:$0]  %s391, 16, %s4, [#allocation9]
    $region29: #{tpu_custom_call.1} parent=1 // pred_fallthru
      _
    // Predicated region
    $region30: #{tpu_custom_call.1} parent=1 // pred_check
      _
    $region31: #{tpu_custom_call.1} parent=1 // pred_check_branch
      %395 = sbr.rel (0) target = $region33
    $region32: #{tpu_custom_call.1} parent=1 // pred_region
      %s397 = ssub.s32 16, 16
      %398 = vsyncadd [#allocation9], %s397
      %s400 = sshll.u32 [#allocation10], 4
      %s401 = int_to_ptr.vmem [resolvable:$true] %s400
      %403 = dma.vmem_to_hbm [thread:$0]  %s401, 16, %s5, [#allocation9]
    $region33: #{tpu_custom_call.1} parent=1 // pred_fallthru
      _
    // Predicated region
    $region34: #{tpu_custom_call.1} parent=1 // pred_check
      _
    $region35: #{tpu_custom_call.1} parent=1 // pred_check_branch
      %405 = sbr.rel (0) target = $region37
    $region36: #{tpu_custom_call.1} parent=1 // pred_region
      %406 = dma.done [#allocation4], 128
    $region37: #{tpu_custom_call.1} parent=1 // pred_fallthru
      _
    // Predicated region
    $region38: #{tpu_custom_call.1} parent=1 // pred_check
      _
    $region39: #{tpu_custom_call.1} parent=1 // pred_check_branch
      %408 = sbr.rel (0) target = $region41
    $region40: #{tpu_custom_call.1} parent=1 // pred_region
      %409 = dma.done [#allocation9], 16
    $region41: #{tpu_custom_call.1} parent=1 // pred_fallthru
      _
    // Predicated region
    $region42: #{tpu_custom_call.1} parent=1 // pred_check
      _
    $region43: #{tpu_custom_call.1} parent=1 // pred_check_branch
      %411 = sbr.rel (0) target = $region45
    $region44: #{tpu_custom_call.1} parent=1 // pred_region
      %412 = dma.done [#allocation9], 16
    $region45: #{tpu_custom_call.1} parent=1 // pred_fallthru
      _
    %413 = vsyncpa [#allocation3], 1
    %414 = vsyncpa [#allocation6], 1
    %415 = vsyncpa [#allocation4], 1
    %416 = vsyncpa [#allocation9], 1

</llo_original>
